<compile_context>
chip_gen: v7x
topology: tpu7x:2x2x1
jax: 0.10.0
libtpu: 0.0.40
codegen_flags: <defaults>
</compile_context>

<pallas_src>
import functools

import jax
import jax.numpy as jnp
from jax.experimental import pallas as pl
from jax.experimental.pallas import tpu as pltpu


def _round_up(x, m):
    return -(-x // m) * m


def _const_block_spec(shape, index_map):
    """Constant-index BlockSpec; single-buffered when the API supports it."""
    try:
        return pl.BlockSpec(shape, index_map, pipeline_mode=pl.Buffered(1))
    except Exception:  # pragma: no cover - older API without pipeline_mode
        return pl.BlockSpec(shape, index_map)


def _vmem_budget():
    """(vmem_limit_bytes, per-step block budget) for the current chip generation."""
    try:
        cap = int(pltpu.get_tpu_info().vmem_capacity_bytes)
    except Exception:  # pragma: no cover - conservative default = v7x per-TC VMEM
        cap = 64 << 20
    limit = min(cap * 3 // 4, 100 << 20)   # ~48 MiB on v7x, ~96 MiB on v5e/v6e
    return limit, limit * 4 // 5


def _pick_row_tile(N, H, W, Cin, Cg, Cout_p, budget):
    """Largest row strip fitting VMEM, keeping >=8 grid steps and TH*W<=2048."""
    def need(t):
        return (2 * (t + 2) * (W + 2) * Cin * 2     # input strip  (bf16, 2 bufs)
                + 3 * Cg * Cout_p * 2               # weight       (bf16, 1 buf)
                + 2 * Cout_p * 4                    # bias         (f32,  2 bufs)
                + 2 * t * W * Cout_p * 2            # output       (bf16, 2 bufs)
                + t * W * 3 * Cg * 2)               # im2col slab scratch (bf16)

    cands = [t for t in range(1, H + 1) if H % t == 0 and (t * W) % 8 == 0]
    if not cands:
        raise ValueError("need a row tile TH with H % TH == 0 and (TH*W) % 8 == 0")
    fits = [t for t in cands if need(t) <= budget] or [min(cands)]
    sized = [t for t in fits if t * W <= 2048] or [min(fits)]
    good = [t for t in sized if N * (H // t) >= 8]
    return max(good) if good else max(sized)


# ----------------------------------------------------------------------------
# Pallas kernel: one (batch, row-strip) tile of  conv3x3 + folded-BN + ReLU
# ----------------------------------------------------------------------------
def _conv3x3_bn_relu_kernel(x_ref, w_ref, b_ref, o_ref, col_ref,
                            *, TH, W, Cin, Cg):
    """
    x_ref   : (1, 1, TH+2, W+2, Cin) bf16   strip + 1-row halo (pre-stacked in HBM)
    w_ref   : (3*Cg, Cout_p)         bf16   BN-scale-folded weights, dw-grouped rows
    b_ref   : (1, Cout_p)            f32    folded BN bias
    o_ref   : (1, TH*W, Cout_p)      bf16   output strip (rows flattened)
    col_ref : (TH*W, 3*Cg)           bf16   im2col slab scratch
    """
    gpad = Cg - 3 * Cin
    zpad = jnp.zeros((TH, W, gpad), jnp.bfloat16) if gpad else None  # hoisted

    # im2col: one lane-dense (128-aligned, Cg-wide) store per dw group.
    for dw in range(3):
        xs = x_ref[0, 0, :, dw:dw + W, :]               # (TH+2, W, Cin)
        parts = [xs[dh:dh + TH] for dh in range(3)]     # 3 x (TH, W, Cin)
        if gpad:
            parts.append(zpad)
        chunk = jnp.concatenate(parts, axis=-1)         # (TH, W, Cg)
        col_ref[:, dw * Cg:(dw + 1) * Cg] = chunk.reshape(TH * W, Cg)

    # One long-K MXU matmul (K = 3*Cg), f32 accumulation.
    y = jnp.dot(col_ref[...], w_ref[...], preferred_element_type=jnp.float32)

    # Folded-BN bias + ReLU epilogue in f32, bf16 store.
    y = jnp.maximum(y + b_ref[...], 0.0)
    o_ref[0] = y.astype(o_ref.dtype)


# ----------------------------------------------------------------------------
# Wrapper
# ----------------------------------------------------------------------------
def conv2d_block(x_nchw, w_oihw, gamma, beta, running_mean, running_var,
                 *, eps=1e-5, row_tile=None):
    """Conv2DBlock forward (eval-mode BN): NCHW input -> NCHW output."""
    # TODO(synk): training-mode BatchNorm (batch statistics over N,H,W and
    #             running-stat updates) is not reproduced; eval-mode BN only.
    N, Cin, H, W = x_nchw.shape
    Cout = w_oihw.shape[0]
    Cout_p = _round_up(Cout, 128)          # lane-dense output / epilogue
    Cg = _round_up(3 * Cin, 128)           # lane-aligned dw-group width in the slab

    vmem_limit, budget = _vmem_budget()
    TH = row_tile if row_tile is not None else _pick_row_tile(
        N, H, W, Cin, Cg, Cout_p, budget)
    if (H % TH) or ((TH * W) % 8):
        raise ValueError("need H % row_tile == 0 and (row_tile*W) % 8 == 0")
    S = H // TH

    # Fold eval-mode BN: scale -> weights, bias stays in the kernel epilogue.
    scale = gamma / jnp.sqrt(running_var + eps)
    bias = (beta - running_mean * scale).astype(jnp.float32)
    bias_p = jnp.pad(bias, (0, Cout_p - Cout)).reshape(1, Cout_p)

    # PyTorch (O,I,3,3) -> (3,3,I,O); rows grouped by dw: [dh0|dh1|dh2|zero-pad]x3.
    w_hwio = jnp.transpose(w_oihw * scale[:, None, None, None],
                           (2, 3, 1, 0)).astype(jnp.bfloat16)     # (3,3,Cin,Cout)
    groups = []
    for dw in range(3):
        g = w_hwio[:, dw].reshape(3 * Cin, Cout)
        groups.append(jnp.pad(g, ((0, Cg - 3 * Cin), (0, Cout_p - Cout))))
    w_flat = jnp.concatenate(groups, axis=0)                      # (3*Cg, Cout_p)

    # NCHW -> NHWC bf16, 1-px zero pad, pre-stack halo-duplicated row strips.
    x = jnp.transpose(x_nchw, (0, 2, 3, 1)).astype(jnp.bfloat16)
    xpad = jnp.pad(x, ((0, 0), (1, 1), (1, 1), (0, 0)))           # (N,H+2,W+2,Cin)
    strips = jnp.stack([xpad[:, s * TH:s * TH + TH + 2] for s in range(S)],
                       axis=1)                                    # (N,S,TH+2,W+2,Cin)

    kernel = functools.partial(_conv3x3_bn_relu_kernel,
                               TH=TH, W=W, Cin=Cin, Cg=Cg)

    out = pl.pallas_call(
        kernel,
        out_shape=jax.ShapeDtypeStruct((N, H * W, Cout_p), jnp.bfloat16),
        grid_spec=pltpu.PrefetchScalarGridSpec(
            num_scalar_prefetch=0,
            grid=(N, S),
            in_specs=[
                # strip + halo, one DMA per grid step
                pl.BlockSpec((1, 1, TH + 2, W + 2, Cin),
                             lambda n, s: (n, s, 0, 0, 0)),
                # resident weight (constant index -> fetched once, single buffer)
                _const_block_spec((3 * Cg, Cout_p), lambda n, s: (0, 0)),
                # folded BN bias
                pl.BlockSpec((1, Cout_p), lambda n, s: (0, 0)),
            ],
            out_specs=pl.BlockSpec((1, TH * W, Cout_p), lambda n, s: (n, s, 0)),
            scratch_shapes=[pltpu.VMEM((TH * W, 3 * Cg), jnp.bfloat16)],
        ),
        compiler_params=pltpu.CompilerParams(
            dimension_semantics=("parallel", "parallel"),
            vmem_limit_bytes=int(vmem_limit)),
    )(strips, w_flat, bias_p)

    # (N, H*W, Cout_p) -> (N, H, W, Cout) -> NCHW, back to the module dtype.
    out = out.reshape(N, H, W, Cout_p)[..., :Cout]
    return jnp.transpose(out, (0, 3, 1, 2)).astype(x_nchw.dtype)


# ----------------------------------------------------------------------------
# Pure-JAX reference (same bf16 operands / folded scale, f32 accumulation)
# ----------------------------------------------------------------------------
def _reference(x_nchw, w_oihw, gamma, beta, mean, var, eps=1e-5):
    scale = gamma / jnp.sqrt(var + eps)
    bias = beta - mean * scale
    x = jnp.transpose(x_nchw, (0, 2, 3, 1)).astype(jnp.bfloat16)
    w = jnp.transpose(w_oihw * scale[:, None, None, None],
                      (2, 3, 1, 0)).astype(jnp.bfloat16)          # HWIO
    y = jax.lax.conv_general_dilated(
        x, w, window_strides=(1, 1), padding="SAME",
        dimension_numbers=("NHWC", "HWIO", "NHWC"),
        preferred_element_type=jnp.float32)
    y = jnp.maximum(y + bias, 0.0)
    return jnp.transpose(y, (0, 3, 1, 2))


# ----------------------------------------------------------------------------
if __name__ == "__main__":
    N, IN_DIM, OUT_DIM, H, W = 2, 32, 64, 16, 16

    key = jax.random.PRNGKey(0)
    kx, kw, kg, kb, km, kv = jax.random.split(key, 6)
    x = jax.random.normal(kx, (N, IN_DIM, H, W), jnp.float32)
    w = (jax.random.normal(kw, (OUT_DIM, IN_DIM, 3, 3), jnp.float32)
         * (1.0 / jnp.sqrt(9.0 * IN_DIM)))
    gamma = 1.0 + 0.1 * jax.random.normal(kg, (OUT_DIM,), jnp.float32)
    beta = 0.1 * jax.random.normal(kb, (OUT_DIM,), jnp.float32)
    running_mean = 0.1 * jax.random.normal(km, (OUT_DIM,), jnp.float32)
    running_var = 1.0 + 0.1 * jax.random.uniform(kv, (OUT_DIM,), jnp.float32)

    fwd = jax.jit(conv2d_block)
    out = jax.block_until_ready(fwd(x, w, gamma, beta, running_mean, running_var))

    ref = _reference(x, w, gamma, beta, running_mean, running_var)

    assert out.shape == (N, OUT_DIM, H, W), out.shape
    assert bool(jnp.all(jnp.isfinite(out)))
    assert bool(jnp.all(out >= 0.0))                       # ReLU output range
    assert bool(jnp.allclose(out, ref, atol=2e-2, rtol=2e-2))
    print("KERNEL_OK")
</pallas_src>

<mosaic_0001>
module attributes {stable_mosaic.version = 11 : i64} {
  func.func @_conv3x3_bn_relu_kernel(%arg0: i32, %arg1: i32, %arg2: memref<1x1x6x18x32xbf16, #tpu.memory_space<vmem>>, %arg3: memref<384x128xbf16, #tpu.memory_space<vmem>>, %arg4: memref<1x128xf32, #tpu.memory_space<vmem>>, %arg5: memref<1x64x128xbf16, #tpu.memory_space<vmem>>, %arg6: memref<64x384xbf16, #tpu.memory_space<vmem>>) attributes {dimension_semantics = [#tpu.dimension_semantics<parallel>, #tpu.dimension_semantics<parallel>], iteration_bounds = array<i64: 2, 4>, scalar_prefetch = 0 : i64, scratch_operands = 1 : i64, tpu.core_type = #tpu.core_type<tc>, window_params = [{transform_indices = @transform_0, window_bounds = array<i64: 1, 1, 6, 18, 32>}, {pipeline_mode = #tpu.pipeline_mode<synchronous>, transform_indices = @transform_1, window_bounds = array<i64: 384, 128>}, {pipeline_mode = #tpu.pipeline_mode<synchronous>, transform_indices = @transform_2, window_bounds = array<i64: 1, 128>}, {transform_indices = @transform_3, window_bounds = array<i64: 1, 64, 128>}]} {
    %cst = arith.constant 0.000000e+00 : bf16
    %0 = vector.broadcast %cst : bf16 to vector<4x16x32xbf16>
    %c0 = arith.constant 0 : index
    %c0_0 = arith.constant 0 : index
    %c0_1 = arith.constant 0 : index
    %c0_2 = arith.constant 0 : index
    %c0_3 = arith.constant 0 : index
    %1 = vector.load %arg2[%c0, %c0_0, %c0_1, %c0_2, %c0_3] : memref<1x1x6x18x32xbf16, #tpu.memory_space<vmem>>, vector<1x1x6x16x32xbf16>
    %2 = vector.shape_cast %1 : vector<1x1x6x16x32xbf16> to vector<6x16x32xbf16>
    %3 = vector.extract_strided_slice %2 {offsets = [0, 0, 0], sizes = [4, 16, 32], strides = [1, 1, 1]} : vector<6x16x32xbf16> to vector<4x16x32xbf16>
    %4 = vector.extract_strided_slice %2 {offsets = [1, 0, 0], sizes = [4, 16, 32], strides = [1, 1, 1]} : vector<6x16x32xbf16> to vector<4x16x32xbf16>
    %5 = vector.extract_strided_slice %2 {offsets = [2, 0, 0], sizes = [4, 16, 32], strides = [1, 1, 1]} : vector<6x16x32xbf16> to vector<4x16x32xbf16>
    %6 = tpu.concatenate %3, %4, %5, %0 in 2 : vector<4x16x32xbf16>, vector<4x16x32xbf16>, vector<4x16x32xbf16>, vector<4x16x32xbf16> -> vector<4x16x128xbf16>
    %7 = vector.shape_cast %6 : vector<4x16x128xbf16> to vector<64x128xbf16>
    %c0_4 = arith.constant 0 : index
    %c0_5 = arith.constant 0 : index
    %8 = vector.load %arg6[%c0_4, %c0_5] : memref<64x384xbf16, #tpu.memory_space<vmem>>, vector<64x128xbf16>
    tpu.vector_store %arg6[%c0_4, %c0_5], %7 {strides = array<i32>} : memref<64x384xbf16, #tpu.memory_space<vmem>>, vector<64x128xbf16>,
    %c0_6 = arith.constant 0 : index
    %c0_7 = arith.constant 0 : index
    %c0_8 = arith.constant 0 : index
    %c1 = arith.constant 1 : index
    %c0_9 = arith.constant 0 : index
    %9 = vector.load %arg2[%c0_6, %c0_7, %c0_8, %c1, %c0_9] : memref<1x1x6x18x32xbf16, #tpu.memory_space<vmem>>, vector<1x1x6x16x32xbf16>
    %10 = vector.shape_cast %9 : vector<1x1x6x16x32xbf16> to vector<6x16x32xbf16>
    %11 = vector.extract_strided_slice %10 {offsets = [0, 0, 0], sizes = [4, 16, 32], strides = [1, 1, 1]} : vector<6x16x32xbf16> to vector<4x16x32xbf16>
    %12 = vector.extract_strided_slice %10 {offsets = [1, 0, 0], sizes = [4, 16, 32], strides = [1, 1, 1]} : vector<6x16x32xbf16> to vector<4x16x32xbf16>
    %13 = vector.extract_strided_slice %10 {offsets = [2, 0, 0], sizes = [4, 16, 32], strides = [1, 1, 1]} : vector<6x16x32xbf16> to vector<4x16x32xbf16>
    %14 = tpu.concatenate %11, %12, %13, %0 in 2 : vector<4x16x32xbf16>, vector<4x16x32xbf16>, vector<4x16x32xbf16>, vector<4x16x32xbf16> -> vector<4x16x128xbf16>
    %15 = vector.shape_cast %14 : vector<4x16x128xbf16> to vector<64x128xbf16>
    %c0_10 = arith.constant 0 : index
    %c128 = arith.constant 128 : index
    %16 = vector.load %arg6[%c0_10, %c128] : memref<64x384xbf16, #tpu.memory_space<vmem>>, vector<64x128xbf16>
    tpu.vector_store %arg6[%c0_10, %c128], %15 {strides = array<i32>} : memref<64x384xbf16, #tpu.memory_space<vmem>>, vector<64x128xbf16>,
    %c0_11 = arith.constant 0 : index
    %c0_12 = arith.constant 0 : index
    %c0_13 = arith.constant 0 : index
    %c2 = arith.constant 2 : index
    %c0_14 = arith.constant 0 : index
    %17 = vector.load %arg2[%c0_11, %c0_12, %c0_13, %c2, %c0_14] : memref<1x1x6x18x32xbf16, #tpu.memory_space<vmem>>, vector<1x1x6x16x32xbf16>
    %18 = vector.shape_cast %17 : vector<1x1x6x16x32xbf16> to vector<6x16x32xbf16>
    %19 = vector.extract_strided_slice %18 {offsets = [0, 0, 0], sizes = [4, 16, 32], strides = [1, 1, 1]} : vector<6x16x32xbf16> to vector<4x16x32xbf16>
    %20 = vector.extract_strided_slice %18 {offsets = [1, 0, 0], sizes = [4, 16, 32], strides = [1, 1, 1]} : vector<6x16x32xbf16> to vector<4x16x32xbf16>
    %21 = vector.extract_strided_slice %18 {offsets = [2, 0, 0], sizes = [4, 16, 32], strides = [1, 1, 1]} : vector<6x16x32xbf16> to vector<4x16x32xbf16>
    %22 = tpu.concatenate %19, %20, %21, %0 in 2 : vector<4x16x32xbf16>, vector<4x16x32xbf16>, vector<4x16x32xbf16>, vector<4x16x32xbf16> -> vector<4x16x128xbf16>
    %23 = vector.shape_cast %22 : vector<4x16x128xbf16> to vector<64x128xbf16>
    %c0_15 = arith.constant 0 : index
    %c256 = arith.constant 256 : index
    %24 = vector.load %arg6[%c0_15, %c256] : memref<64x384xbf16, #tpu.memory_space<vmem>>, vector<64x128xbf16>
    tpu.vector_store %arg6[%c0_15, %c256], %23 {strides = array<i32>} : memref<64x384xbf16, #tpu.memory_space<vmem>>, vector<64x128xbf16>,
    %c0_16 = arith.constant 0 : index
    %c0_17 = arith.constant 0 : index
    %25 = vector.load %arg6[%c0_16, %c0_17] : memref<64x384xbf16, #tpu.memory_space<vmem>>, vector<64x384xbf16>
    %c0_18 = arith.constant 0 : index
    %c0_19 = arith.constant 0 : index
    %26 = vector.load %arg3[%c0_18, %c0_19] : memref<384x128xbf16, #tpu.memory_space<vmem>>, vector<384x128xbf16>
    %cst_20 = arith.constant dense<0.000000e+00> : vector<64x128xf32>
    %27 = tpu.matmul %25, %26, %cst_20 {dimension_numbers = #tpu.dot_dimension_numbers<[1], [0], [0], [1], [0, 0, 1, 1], [], []>} : vector<64x384xbf16>, vector<384x128xbf16>, vector<64x128xf32> -> vector<64x128xf32>
    %c0_21 = arith.constant 0 : index
    %c0_22 = arith.constant 0 : index
    %28 = vector.load %arg4[%c0_21, %c0_22] : memref<1x128xf32, #tpu.memory_space<vmem>>, vector<1x128xf32>
    %29 = vector.broadcast %28 : vector<1x128xf32> to vector<64x128xf32>
    %30 = arith.addf %27, %29 : vector<64x128xf32>
    %cst_23 = arith.constant 0.000000e+00 : f32
    %31 = vector.broadcast %cst_23 : f32 to vector<64x128xf32>
    %32 = arith.maximumf %30, %31 : vector<64x128xf32>
    %33 = arith.truncf %32 : vector<64x128xf32> to vector<64x128xbf16>
    %c0_24 = arith.constant 0 : index
    %c0_25 = arith.constant 0 : index
    %c0_26 = arith.constant 0 : index
    %34 = vector.load %arg5[%c0_24, %c0_25, %c0_26] : memref<1x64x128xbf16, #tpu.memory_space<vmem>>, vector<1x64x128xbf16>
    %35 = vector.shape_cast %34 : vector<1x64x128xbf16> to vector<64x128xbf16>
    %36 = vector.shape_cast %33 : vector<64x128xbf16> to vector<1x64x128xbf16>
    tpu.vector_store %arg5[%c0_24, %c0_25, %c0_26], %36 {strides = array<i32>} : memref<1x64x128xbf16, #tpu.memory_space<vmem>>, vector<1x64x128xbf16>,
    return
  }
  func.func @transform_0(%arg0: i32, %arg1: i32) -> (i32, i32, i32, i32, i32) {
    %c0_i32 = arith.constant 0 : i32
    %c0_i32_0 = arith.constant 0 : i32
    %c0_i32_1 = arith.constant 0 : i32
    %c0_i32_2 = arith.constant 0 : i32
    return %arg0, %arg1, %c0_i32, %c0_i32_0, %c0_i32_1 : i32, i32, i32, i32, i32
  }
  func.func @transform_1(%arg0: i32, %arg1: i32) -> (i32, i32) {
    %c0_i32 = arith.constant 0 : i32
    %c0_i32_0 = arith.constant 0 : i32
    %c0_i32_1 = arith.constant 0 : i32
    return %c0_i32, %c0_i32_0 : i32, i32
  }
  func.func @transform_2(%arg0: i32, %arg1: i32) -> (i32, i32) {
    %c0_i32 = arith.constant 0 : i32
    %c0_i32_0 = arith.constant 0 : i32
    %c0_i32_1 = arith.constant 0 : i32
    return %c0_i32, %c0_i32_0 : i32, i32
  }
  func.func @transform_3(%arg0: i32, %arg1: i32) -> (i32, i32, i32) {
    %c0_i32 = arith.constant 0 : i32
    %c0_i32_0 = arith.constant 0 : i32
    return %arg0, %arg1, %c0_i32 : i32, i32, i32
  }
}

</mosaic_0001>

<llo_original>
// kernel: conv2d_block.1
$region0: #{conv2d_block.1}
  #allocation0 [shape = 'u32[]', space=smem, size = 0x4, offset = 0x4, fixed_abs, tag = 'smem constant byte address 0x4 - core index']
  #allocation1 [shape = 'u32[144,128]{1,0:T(1,128)}', space=vmem, size = 0x12000, scoped, tag = 'internal scratch']
  #allocation2 [shape = 'bf16[64,384]{1,0:T(16,128)(2,1)}', space=vmem, size = 0xc000, scoped, tag = 'scratch operand']
  %s0 = inlined_call_operand.vmem [shape: bf16[2,4,6,18,32], index: 0, kind: input, shape index: {}]
  %s1 = inlined_call_operand.vmem [shape: bf16[384,128], index: 1, kind: input, shape index: {}]
  %s2 = inlined_call_operand.vmem [shape: f32[1,128], index: 2, kind: input, shape index: {}]
  %s3 = inlined_call_operand.vmem [shape: bf16[2,256,128], index: 3, kind: output, shape index: {}]
  %s4 = sld [smem:[#allocation0]]
  $region45: #{conv2d_block.1} parent=0
    _
  %s6 = ssub.s32 1, %s4
  %s7 = scalar_select 0, %s6, %s4
  loop: start=0, step=1, limit=10
  $region2: #{conv2d_block.1} parent=0 // loop_pre_header
    _
  $region3: #{conv2d_block.1} parent=0 // loop_header
    %s9 = sphi 0, %s13
    %p10 = scmp.ge.s32.totalorder %s9, 10
    %s16 = sphi 0, %s28
    %s17 = sphi 0, %s24
    %s18 = sphi 0, %s16
    %s19 = sphi 0, %s17
    %s20 = sphi 0, %s18
    %s21 = sphi 0, %s19
    %s33 = sphi 0, %s35
    %s36 = sphi 0, %s33
    %s37 = sphi 0, %s36
    %s53 = sphi 0, %s37
    %s57 = sphi 0, %s57
    %s59 = sphi 0, %s57
    %s60 = sphi 0, %s59
    %s74 = sphi 0, %s60
    %s78 = sphi 0, %s78
    %s80 = sphi 0, %s78
    %s81 = sphi 0, %s80
    %s95 = sphi 0, %s81
    %s103 = sphi 0, %s105
    %s106 = sphi 0, %s103
    %s107 = sphi 0, %s106
    %s123 = sphi 0, %s107
  $region4: #{conv2d_block.1} parent=0 // loop_header_branch
    %12 = sbr.rel (%p10) target = $region8
  $region5: #{conv2d_block.1} parent=0 // loop_body
    %s14 = ssub.s32 %s9, 1
    %s15 = ssub.s32 %s9, 2
    %s22 = sadd.s32 1, %s17
    %p23 = scmp.ge.s32.totalorder %s22, 4
    %s24 = scalar_select %p23, 0, %s22
    %s25 = sadd.s32 1, %s16
    %s26 = scalar_select %p23, %s25, %s16
    %p27 = scmp.ge.s32.totalorder %s26, 2
    %s28 = scalar_select %p27, 0, %s26
    %s29 = ssub.s32 %s16, %s28
    %s30 = ssub.s32 %s17, %s24
    %s31 = sor.u32 %s29, %s30
    %p32 = scmp.eq.s32.totalorder %s31, 0
    %s34 = sadd.s32 %s33, 1
    %s35 = scalar_select %p32, %s33, %s34
    %p38 = pneg %p32
    %p39 = scmp.eq.s32.totalorder %s9, 7
    %p40 = por %p38, %p39
    %p41 = scmp.ne.s32.totalorder %s33, %s36
    %p42 = scmp.eq.s32.totalorder %s9, 0
    %p43 = por %p41, %p42
    %p44 = scmp.ne.s32.totalorder %s33, %s36
    %p45 = scmp.eq.s32.totalorder %s14, 7
    %p46 = por %p44, %p45
    %p47 = scmp.ne.s32.totalorder %s36, %s37
    %p48 = scmp.eq.s32.totalorder %s14, 0
    %p49 = por %p47, %p48
    %p50 = scmp.ne.s32.totalorder %s36, %s37
    %p51 = scmp.eq.s32.totalorder %s15, 7
    %p52 = por %p50, %p51
    %p54 = scmp.ne.s32.totalorder %s37, %s53
    %p55 = scmp.eq.s32.totalorder %s15, 0
    %p56 = por %p54, %p55
    %s58 = sadd.s32 %s57, 1
    %p61 = scmp.eq.s32.totalorder %s9, 7
    %p62 = scmp.ne.s32.totalorder %s57, %s59
    %p63 = scmp.eq.s32.totalorder %s9, 0
    %p64 = por %p62, %p63
    %p65 = scmp.ne.s32.totalorder %s57, %s59
    %p66 = scmp.eq.s32.totalorder %s14, 7
    %p67 = por %p65, %p66
    %p68 = scmp.ne.s32.totalorder %s59, %s60
    %p69 = scmp.eq.s32.totalorder %s14, 0
    %p70 = por %p68, %p69
    %p71 = scmp.ne.s32.totalorder %s59, %s60
    %p72 = scmp.eq.s32.totalorder %s15, 7
    %p73 = por %p71, %p72
    %p75 = scmp.ne.s32.totalorder %s60, %s74
    %p76 = scmp.eq.s32.totalorder %s15, 0
    %p77 = por %p75, %p76
    %s79 = sadd.s32 %s78, 1
    %p82 = scmp.eq.s32.totalorder %s9, 7
    %p83 = scmp.ne.s32.totalorder %s78, %s80
    %p84 = scmp.eq.s32.totalorder %s9, 0
    %p85 = por %p83, %p84
    %p86 = scmp.ne.s32.totalorder %s78, %s80
    %p87 = scmp.eq.s32.totalorder %s14, 7
    %p88 = por %p86, %p87
    %p89 = scmp.ne.s32.totalorder %s80, %s81
    %p90 = scmp.eq.s32.totalorder %s14, 0
    %p91 = por %p89, %p90
    %p92 = scmp.ne.s32.totalorder %s80, %s81
    %p93 = scmp.eq.s32.totalorder %s15, 7
    %p94 = por %p92, %p93
    %p96 = scmp.ne.s32.totalorder %s81, %s95
    %p97 = scmp.eq.s32.totalorder %s15, 0
    %p98 = por %p96, %p97
    %s99 = ssub.s32 %s16, %s28
    %s100 = ssub.s32 %s17, %s24
    %s101 = sor.u32 %s99, %s100
    %p102 = scmp.eq.s32.totalorder %s101, 0
    %s104 = sadd.s32 %s103, 1
    %s105 = scalar_select %p102, %s103, %s104
    %p108 = pneg %p102
    %p109 = scmp.eq.s32.totalorder %s9, 7
    %p110 = por %p108, %p109
    %p111 = scmp.ne.s32.totalorder %s103, %s106
    %p112 = scmp.eq.s32.totalorder %s9, 0
    %p113 = por %p111, %p112
    %p114 = scmp.ne.s32.totalorder %s103, %s106
    %p115 = scmp.eq.s32.totalorder %s14, 7
    %p116 = por %p114, %p115
    %p117 = scmp.ne.s32.totalorder %s106, %s107
    %p118 = scmp.eq.s32.totalorder %s14, 0
    %p119 = por %p117, %p118
    %p120 = scmp.ne.s32.totalorder %s106, %s107
    %p121 = scmp.eq.s32.totalorder %s15, 7
    %p122 = por %p120, %p121
    %p124 = scmp.ne.s32.totalorder %s107, %s123
    %p125 = scmp.eq.s32.totalorder %s15, 0
    %p126 = por %p124, %p125
    %p127 = scmp.le.s32.totalorder 1, %s9
    %p128 = scmp.lt.s32.totalorder %s9, 9
    %p129 = pnand %p127, %p128
    %p130 = pneg %p129
    // Predicated region
    $region9: #{conv2d_block.1} parent=5 // pred_check
      _
    $region10: #{conv2d_block.1} parent=5 // pred_check_branch
      %132 = sbr.rel (%p129) target = $region12
    $region11: #{conv2d_block.1} parent=5 // pred_region
      %s133 = ssub.s32 %s9, 1
      // Predicated region
      $region13: #{conv2d_block.1} parent=11 // pred_check
        %p134 = pneg %p70
      $region14: #{conv2d_block.1} parent=11 // pred_check_branch
        %136 = sbr.rel (%p134) target = $region16
      $region15: #{conv2d_block.1} parent=11 // pred_region
        _
      $region16: #{conv2d_block.1} parent=11 // pred_fallthru
        _
      // Predicated region
      $region17: #{conv2d_block.1} parent=11 // pred_check
        %p137 = pneg %p91
      $region18: #{conv2d_block.1} parent=11 // pred_check_branch
        %139 = sbr.rel (%p137) target = $region20
      $region19: #{conv2d_block.1} parent=11 // pred_region
        _
      $region20: #{conv2d_block.1} parent=11 // pred_fallthru
        _
    $region12: #{conv2d_block.1} parent=5 // pred_fallthru
      _
    %p140 = scmp.lt.s32.totalorder %s9, 8
    // Predicated region
    $region21: #{conv2d_block.1} parent=5 // pred_check
      %p141 = pneg %p140
    $region22: #{conv2d_block.1} parent=5 // pred_check_branch
      %143 = sbr.rel (%p141) target = $region24
    $region23: #{conv2d_block.1} parent=5 // pred_region
      // Predicated region
      $region25: #{conv2d_block.1} parent=23 // pred_check
        %p144 = pneg %p43
      $region26: #{conv2d_block.1} parent=23 // pred_check_branch
        %146 = sbr.rel (%p144) target = $region28
      $region27: #{conv2d_block.1} parent=23 // pred_region
        %p147 = scmp.lt.s32.totalorder %s16, 1
        %s148 = scalar_select %p147, %s16, 1
        %p149 = scmp.lt.s32.totalorder %s17, 3
        %s150 = scalar_select %p149, %s17, 3
        %s151 = smul.addr %s150, 18
        %s152 = smul.addr %s148, 72
        %s153 = sadd.s32 %s151, %s152
        %s154 = smul.addr %s153, 4
        %s155 = scalar_lea.vmem %s0, %s154
      $region28: #{conv2d_block.1} parent=23 // pred_fallthru
        _
    $region24: #{conv2d_block.1} parent=5 // pred_fallthru
      _
    %p156 = scmp.le.s32.totalorder 1, %s9
    %p157 = scmp.lt.s32.totalorder %s9, 9
    %p158 = pnand %p156, %p157
    %p159 = pneg %p158
    // Predicated region
    $region29: #{conv2d_block.1} parent=5 // pred_check
      _
    $region30: #{conv2d_block.1} parent=5 // pred_check_branch
      %161 = sbr.rel (%p158) target = $region32
    $region31: #{conv2d_block.1} parent=5 // pred_region
      %s162 = ssub.s32 %s9, 1
      %p163 = scmp.lt.s32.totalorder %s18, 1
      %s164 = scalar_select %p163, %s18, 1
      %p165 = scmp.lt.s32.totalorder %s19, 3
      %s166 = scalar_select %p165, %s19, 3
      %s167 = smul.addr %s166, 18
      %s168 = smul.addr %s164, 72
      %s169 = sadd.s32 %s167, %s168
      %s170 = smul.addr %s169, 4
      %s171 = scalar_lea.vmem %s0, %s170
      %p172 = pneg %p49
      %p173 = pneg %p46
      %p174 = pneg %p70
      %p175 = pneg %p67
      %p176 = pneg %p91
      %p177 = pneg %p88
      %p178 = pneg %p119
      %p179 = pneg %p116
      %s180 = smul.u32 8, %s19
      %p181 = scmp.lt.s32.totalorder %s18, 1
      %s182 = scalar_select %p181, %s18, 1
      %p183 = scmp.lt.s32.totalorder %s180, 31
      %s184 = scalar_select %p183, %s180, 31
      %s185 = smul.addr %s182, 32
      %s186 = sadd.s32 %s184, %s185
      %s187 = smul.addr %s186, 4
      %s188 = scalar_lea.vmem %s3, %s187
      %p189 = scmp.lt.s32.totalorder %s18, 1
      %s190 = scalar_select %p189, %s18, 1
      %p191 = scmp.lt.s32.totalorder %s19, 3
      %s192 = scalar_select %p191, %s19, 3
      %s193 = smul.addr %s192, 18
      %s194 = smul.addr %s190, 72
      %s195 = sadd.s32 %s193, %s194
      %s196 = smul.addr %s195, 4
      %s197 = scalar_lea.vmem %s0, %s196
      %s198 = smul.u32 8, %s19
      %p199 = scmp.lt.s32.totalorder %s18, 1
      %s200 = scalar_select %p199, %s18, 1
      %p201 = scmp.lt.s32.totalorder %s198, 31
      %s202 = scalar_select %p201, %s198, 31
      %s203 = smul.addr %s200, 32
      %s204 = sadd.s32 %s202, %s203
      %s205 = smul.addr %s204, 4
      %s206 = scalar_lea.vmem %s3, %s205
      %s207 = smul.u32 8, %s19
      %v209 = vld [vmem:[%s197] sm:$0xf]
      %v210 = vld [vmem:[%s197 + $0x4] sm:$0xf]
      %v211 = vld [vmem:[%s197 + $0xc] sm:$0xf]
      %v212 = vld [vmem:[%s197 + $0x10] sm:$0xf]
      %v213 = vld [vmem:[%s197 + $0x18] sm:$0xf]
      %v214 = vld [vmem:[%s197 + $0x1c] sm:$0xf]
      %v215 = vld [vmem:[%s197 + $0x24] sm:$0xf]
      %v216 = vld [vmem:[%s197 + $0x28] sm:$0xf]
      %v217 = vld [vmem:[%s197 + $0x30] sm:$0xf]
      %v218 = vld [vmem:[%s197 + $0x34] sm:$0xf]
      %v219 = vld [vmem:[%s197 + $0x3c] sm:$0xf]
      %v220 = vld [vmem:[%s197 + $0x40] sm:$0xf]
      %v229 = vunpack.c.l.b16 %v209
      %v230 = vunpack.c.l.b16 %v210
      %v231 = vunpack.c.l.b16 %v211
      %v232 = vunpack.c.l.b16 %v212
      %v233 = vunpack.c.l.b16 %v213
      %v234 = vunpack.c.l.b16 %v214
      %v235 = vunpack.c.l.b16 %v215
      %v236 = vunpack.c.l.b16 %v216
      %v237 = vpack.c.b16 %v230, %v229
      %v238 = vpack.c.b16 %v232, %v231
      %v239 = vpack.c.b16 %v234, %v233
      %v240 = vpack.c.b16 %v236, %v235
      %v243 = vunpack.c.l.b16 %v217
      %v244 = vunpack.c.l.b16 %v218
      %v245 = vpack.c.b16 %v244, %v243
      %246 = vrot.lane.b32.xlu0 %v238, 32
      %v247 = vpop.permute.xlu0 %246
      %248 = vrot.lane.b32.xlu0 %v239, 32
      %v249 = vpop.permute.xlu0 %248
      %250 = vrot.lane.b32.xlu0 %v240, 32
      %v251 = vpop.permute.xlu0 %250
      %252 = vrot.lane.b32.xlu0 %v245, 32
      %v253 = vpop.permute.xlu0 %252
      %v256 = vunpack.c.l.b16 %v219
      %v257 = vunpack.c.l.b16 %v220
      %v258 = vpack.c.b16 %v257, %v256
      %259 = vrot.lane.b32.xlu0 %v239, 64
      %v260 = vpop.permute.xlu0 %259
      %261 = vrot.lane.b32.xlu0 %v240, 64
      %v262 = vpop.permute.xlu0 %261
      %263 = vrot.lane.b32.xlu0 %v245, 64
      %v264 = vpop.permute.xlu0 %263
      %265 = vrot.lane.b32.xlu0 %v258, 64
      %v266 = vpop.permute.xlu0 %265
      %vm267 = vcmask 261120
      %v270 = vsel %vm267, %v237, %v247
      %v273 = vsel %vm267, %v238, %v249
      %v276 = vsel %vm267, %v239, %v251
      %v279 = vsel %vm267, %v240, %v253
      %vm280 = vcmask 523264
      %v282 = vsel %vm280, %v270, %v260
      %v284 = vsel %vm280, %v273, %v262
      %v286 = vsel %vm280, %v276, %v264
      %v288 = vsel %vm280, %v279, %v266
      %vm289 = vcmask 785408
      %v291 = vsel %vm289, %v282, 0
      %v293 = vsel %vm289, %v284, 0
      %v295 = vsel %vm289, %v286, 0
      %v297 = vsel %vm289, %v288, 0
      %299 = vst [vmem:[#allocation2] sm:$0xff] %v291
      %300 = vst [vmem:[#allocation2 + $0x18] sm:$0xff] %v293
      %301 = vst [vmem:[#allocation2 + $0x30] sm:$0xff] %v295
      %302 = vst [vmem:[#allocation2 + $0x48] sm:$0xff] %v297
      %v303 = vld [vmem:[%s197] sm:$0xf]
      %v304 = vld [vmem:[%s197 + $0x4] sm:$0xf]
      %v305 = vld [vmem:[%s197 + $0x8] sm:$0x1]
      %v306 = vld [vmem:[%s197 + $0xc] sm:$0xf]
      %v307 = vld [vmem:[%s197 + $0x10] sm:$0xf]
      %v308 = vld [vmem:[%s197 + $0x14] sm:$0x1]
      %v309 = vld [vmem:[%s197 + $0x18] sm:$0xf]
      %v310 = vld [vmem:[%s197 + $0x1c] sm:$0xf]
      %v311 = vld [vmem:[%s197 + $0x20] sm:$0x1]
      %v312 = vld [vmem:[%s197 + $0x24] sm:$0xf]
      %v313 = vld [vmem:[%s197 + $0x28] sm:$0xf]
      %v314 = vld [vmem:[%s197 + $0x2c] sm:$0x1]
      %v315 = vld [vmem:[%s197 + $0x30] sm:$0xf]
      %v316 = vld [vmem:[%s197 + $0x34] sm:$0xf]
      %v317 = vld [vmem:[%s197 + $0x38] sm:$0x1]
      %v318 = vld [vmem:[%s197 + $0x3c] sm:$0xf]
      %v319 = vld [vmem:[%s197 + $0x40] sm:$0xf]
      %v320 = vld [vmem:[%s197 + $0x44] sm:$0x1]
      %v333 = vunpack.c.l.b16 %v303
      %v334 = vunpack.c.l.b16 %v304
      %v335 = vunpack.c.l.b16 %v305
      %v336 = vunpack.c.l.b16 %v306
      %v337 = vunpack.c.l.b16 %v307
      %v338 = vunpack.c.l.b16 %v308
      %v339 = vunpack.c.l.b16 %v309
      %v340 = vunpack.c.l.b16 %v310
      %v341 = vunpack.c.l.b16 %v311
      %v342 = vunpack.c.l.b16 %v312
      %v343 = vunpack.c.l.b16 %v313
      %v344 = vunpack.c.l.b16 %v314
      %v345 = vpack.c.b16 %v334, %v333
      %v346 = vpack.c.b16 %v335, %v335
      %v347 = vpack.c.b16 %v337, %v336
      %v348 = vpack.c.b16 %v338, %v338
      %v349 = vpack.c.b16 %v340, %v339
      %v350 = vpack.c.b16 %v341, %v341
      %v351 = vpack.c.b16 %v343, %v342
      %v352 = vpack.c.b16 %v344, %v344
      %v356 = vunpack.c.l.b16 %v315
      %v357 = vunpack.c.l.b16 %v316
      %v358 = vunpack.c.l.b16 %v317
      %v359 = vpack.c.b16 %v357, %v356
      %v360 = vpack.c.b16 %v358, %v358
      %361 = vrot.lane.b32.xlu0 %v347, 32
      %v362 = vpop.permute.xlu0 %361
      %363 = vrot.lane.b32.xlu0 %v348, 32
      %v364 = vpop.permute.xlu0 %363
      %365 = vrot.lane.b32.xlu0 %v349, 32
      %v366 = vpop.permute.xlu0 %365
      %367 = vrot.lane.b32.xlu0 %v350, 32
      %v368 = vpop.permute.xlu0 %367
      %369 = vrot.lane.b32.xlu0 %v351, 32
      %v370 = vpop.permute.xlu0 %369
      %371 = vrot.lane.b32.xlu0 %v352, 32
      %v372 = vpop.permute.xlu0 %371
      %373 = vrot.lane.b32.xlu0 %v359, 32
      %v374 = vpop.permute.xlu0 %373
      %375 = vrot.lane.b32.xlu0 %v360, 32
      %v376 = vpop.permute.xlu0 %375
      %v380 = vunpack.c.l.b16 %v318
      %v381 = vunpack.c.l.b16 %v319
      %v382 = vunpack.c.l.b16 %v320
      %v383 = vpack.c.b16 %v381, %v380
      %v384 = vpack.c.b16 %v382, %v382
      %385 = vrot.lane.b32.xlu0 %v349, 64
      %v386 = vpop.permute.xlu0 %385
      %387 = vrot.lane.b32.xlu0 %v350, 64
      %v388 = vpop.permute.xlu0 %387
      %389 = vrot.lane.b32.xlu0 %v351, 64
      %v390 = vpop.permute.xlu0 %389
      %391 = vrot.lane.b32.xlu0 %v352, 64
      %v392 = vpop.permute.xlu0 %391
      %393 = vrot.lane.b32.xlu0 %v359, 64
      %v394 = vpop.permute.xlu0 %393
      %395 = vrot.lane.b32.xlu0 %v360, 64
      %v396 = vpop.permute.xlu0 %395
      %397 = vrot.lane.b32.xlu0 %v383, 64
      %v398 = vpop.permute.xlu0 %397
      %399 = vrot.lane.b32.xlu0 %v384, 64
      %v400 = vpop.permute.xlu0 %399
      %v403 = vsel %vm267, %v345, %v362
      %v406 = vsel %vm267, %v346, %v364
      %v409 = vsel %vm267, %v347, %v366
      %v412 = vsel %vm267, %v348, %v368
      %v415 = vsel %vm267, %v349, %v370
      %v418 = vsel %vm267, %v350, %v372
      %v421 = vsel %vm267, %v351, %v374
      %v424 = vsel %vm267, %v352, %v376
      %v426 = vsel %vm280, %v403, %v386
      %v428 = vsel %vm280, %v406, %v388
      %v430 = vsel %vm280, %v409, %v390
      %v432 = vsel %vm280, %v412, %v392
      %v434 = vsel %vm280, %v415, %v394
      %v436 = vsel %vm280, %v418, %v396
      %v438 = vsel %vm280, %v421, %v398
      %v440 = vsel %vm280, %v424, %v400
      %v441 = vsel %vm289, %v426, 0
      %v442 = vsel %vm289, %v428, 0
      %v443 = vsel %vm289, %v430, 0
      %v444 = vsel %vm289, %v432, 0
      %v445 = vsel %vm289, %v434, 0
      %v446 = vsel %vm289, %v436, 0
      %v447 = vsel %vm289, %v438, 0
      %v448 = vsel %vm289, %v440, 0
      %vm449 = vsmask.f32 7424
      %v450 = vshrl.u32 %v441, 16
      %v452 = vshll.u32 %v441, 16
      %v454 = vrot.slane %v452, 1
      %v455 = vor.u32 %v450, %v454
      %v456 = vshll.u32 %v442, 16
      %v458 = vrot.slane %v456, 1
      %v459 = vsel %vm449, %v455, %v458
      %v460 = vshrl.u32 %v443, 16
      %v462 = vshll.u32 %v443, 16
      %v464 = vrot.slane %v462, 1
      %v465 = vor.u32 %v460, %v464
      %v466 = vshll.u32 %v444, 16
      %v468 = vrot.slane %v466, 1
      %v469 = vsel %vm449, %v465, %v468
      %v470 = vshrl.u32 %v445, 16
      %v472 = vshll.u32 %v445, 16
      %v474 = vrot.slane %v472, 1
      %v475 = vor.u32 %v470, %v474
      %v476 = vshll.u32 %v446, 16
      %v478 = vrot.slane %v476, 1
      %v479 = vsel %vm449, %v475, %v478
      %v480 = vshrl.u32 %v447, 16
      %v482 = vshll.u32 %v447, 16
      %v484 = vrot.slane %v482, 1
      %v485 = vor.u32 %v480, %v484
      %v486 = vshll.u32 %v448, 16
      %v488 = vrot.slane %v486, 1
      %v489 = vsel %vm449, %v485, %v488
      %494 = vst [vmem:[#allocation2 + $0x8] sm:$0xff] %v459
      %495 = vst [vmem:[#allocation2 + $0x20] sm:$0xff] %v469
      %496 = vst [vmem:[#allocation2 + $0x38] sm:$0xff] %v479
      %497 = vst [vmem:[#allocation2 + $0x50] sm:$0xff] %v489
      %v498 = vld [vmem:[%s197] sm:$0xe]
      %v499 = vld [vmem:[%s197 + $0x4] sm:$0xf]
      %v500 = vld [vmem:[%s197 + $0x8] sm:$0x1]
      %v501 = vld [vmem:[%s197 + $0xc] sm:$0xe]
      %v502 = vld [vmem:[%s197 + $0x10] sm:$0xf]
      %v503 = vld [vmem:[%s197 + $0x14] sm:$0x1]
      %v504 = vld [vmem:[%s197 + $0x18] sm:$0xe]
      %v505 = vld [vmem:[%s197 + $0x1c] sm:$0xf]
      %v506 = vld [vmem:[%s197 + $0x20] sm:$0x1]
      %v507 = vld [vmem:[%s197 + $0x24] sm:$0xe]
      %v508 = vld [vmem:[%s197 + $0x28] sm:$0xf]
      %v509 = vld [vmem:[%s197 + $0x2c] sm:$0x1]
      %v510 = vld [vmem:[%s197 + $0x30] sm:$0xe]
      %v511 = vld [vmem:[%s197 + $0x34] sm:$0xf]
      %v512 = vld [vmem:[%s197 + $0x38] sm:$0x1]
      %v513 = vld [vmem:[%s197 + $0x3c] sm:$0xe]
      %v514 = vld [vmem:[%s197 + $0x40] sm:$0xf]
      %v515 = vld [vmem:[%s197 + $0x44] sm:$0x1]
      %v528 = vunpack.c.l.b16 %v498
      %v529 = vunpack.c.l.b16 %v499
      %v530 = vunpack.c.l.b16 %v500
      %v531 = vunpack.c.l.b16 %v501
      %v532 = vunpack.c.l.b16 %v502
      %v533 = vunpack.c.l.b16 %v503
      %v534 = vunpack.c.l.b16 %v504
      %v535 = vunpack.c.l.b16 %v505
      %v536 = vunpack.c.l.b16 %v506
      %v537 = vunpack.c.l.b16 %v507
      %v538 = vunpack.c.l.b16 %v508
      %v539 = vunpack.c.l.b16 %v509
      %v540 = vpack.c.b16 %v529, %v528
      %v541 = vpack.c.b16 %v530, %v530
      %v542 = vpack.c.b16 %v532, %v531
      %v543 = vpack.c.b16 %v533, %v533
      %v544 = vpack.c.b16 %v535, %v534
      %v545 = vpack.c.b16 %v536, %v536
      %v546 = vpack.c.b16 %v538, %v537
      %v547 = vpack.c.b16 %v539, %v539
      %v551 = vunpack.c.l.b16 %v510
      %v552 = vunpack.c.l.b16 %v511
      %v553 = vunpack.c.l.b16 %v512
      %v554 = vpack.c.b16 %v552, %v551
      %v555 = vpack.c.b16 %v553, %v553
      %556 = vrot.lane.b32.xlu0 %v542, 32
      %v557 = vpop.permute.xlu0 %556
      %558 = vrot.lane.b32.xlu0 %v543, 32
      %v559 = vpop.permute.xlu0 %558
      %560 = vrot.lane.b32.xlu0 %v544, 32
      %v561 = vpop.permute.xlu0 %560
      %562 = vrot.lane.b32.xlu0 %v545, 32
      %v563 = vpop.permute.xlu0 %562
      %564 = vrot.lane.b32.xlu0 %v546, 32
      %v565 = vpop.permute.xlu0 %564
      %566 = vrot.lane.b32.xlu0 %v547, 32
      %v567 = vpop.permute.xlu0 %566
      %568 = vrot.lane.b32.xlu0 %v554, 32
      %v569 = vpop.permute.xlu0 %568
      %570 = vrot.lane.b32.xlu0 %v555, 32
      %v571 = vpop.permute.xlu0 %570
      %v575 = vunpack.c.l.b16 %v513
      %v576 = vunpack.c.l.b16 %v514
      %v577 = vunpack.c.l.b16 %v515
      %v578 = vpack.c.b16 %v576, %v575
      %v579 = vpack.c.b16 %v577, %v577
      %580 = vrot.lane.b32.xlu0 %v544, 64
      %v581 = vpop.permute.xlu0 %580
      %582 = vrot.lane.b32.xlu0 %v545, 64
      %v583 = vpop.permute.xlu0 %582
      %584 = vrot.lane.b32.xlu0 %v546, 64
      %v585 = vpop.permute.xlu0 %584
      %586 = vrot.lane.b32.xlu0 %v547, 64
      %v587 = vpop.permute.xlu0 %586
      %588 = vrot.lane.b32.xlu0 %v554, 64
      %v589 = vpop.permute.xlu0 %588
      %590 = vrot.lane.b32.xlu0 %v555, 64
      %v591 = vpop.permute.xlu0 %590
      %592 = vrot.lane.b32.xlu0 %v578, 64
      %v593 = vpop.permute.xlu0 %592
      %594 = vrot.lane.b32.xlu0 %v579, 64
      %v595 = vpop.permute.xlu0 %594
      %v598 = vsel %vm267, %v540, %v557
      %v601 = vsel %vm267, %v541, %v559
      %v604 = vsel %vm267, %v542, %v561
      %v607 = vsel %vm267, %v543, %v563
      %v610 = vsel %vm267, %v544, %v565
      %v613 = vsel %vm267, %v545, %v567
      %v616 = vsel %vm267, %v546, %v569
      %v619 = vsel %vm267, %v547, %v571
      %v621 = vsel %vm280, %v598, %v581
      %v623 = vsel %vm280, %v601, %v583
      %v625 = vsel %vm280, %v604, %v585
      %v627 = vsel %vm280, %v607, %v587
      %v629 = vsel %vm280, %v610, %v589
      %v631 = vsel %vm280, %v613, %v591
      %v633 = vsel %vm280, %v616, %v593
      %v635 = vsel %vm280, %v619, %v595
      %v636 = vsel %vm289, %v621, 0
      %v637 = vsel %vm289, %v623, 0
      %v638 = vsel %vm289, %v625, 0
      %v639 = vsel %vm289, %v627, 0
      %v640 = vsel %vm289, %v629, 0
      %v641 = vsel %vm289, %v631, 0
      %v642 = vsel %vm289, %v633, 0
      %v643 = vsel %vm289, %v635, 0
      %vm652 = vcmask 1046528
      %v653 = vrot.slane %v636, 1
      %v654 = vrot.slane %v637, 1
      %v655 = vsel %vm652, %v653, %v654
      %v656 = vrot.slane %v638, 1
      %v657 = vrot.slane %v639, 1
      %v658 = vsel %vm652, %v656, %v657
      %v659 = vrot.slane %v640, 1
      %v660 = vrot.slane %v641, 1
      %v661 = vsel %vm652, %v659, %v660
      %v662 = vrot.slane %v642, 1
      %v663 = vrot.slane %v643, 1
      %v664 = vsel %vm652, %v662, %v663
      %669 = vst [vmem:[#allocation2 + $0x10] sm:$0xff] %v655
      %670 = vst [vmem:[#allocation2 + $0x28] sm:$0xff] %v658
      %671 = vst [vmem:[#allocation2 + $0x40] sm:$0xff] %v661
      %672 = vst [vmem:[#allocation2 + $0x58] sm:$0xff] %v664
      %v673 = vld [vmem:[#allocation2] sm:$0xff]
      %v674 = vld [vmem:[#allocation2 + $0x8] sm:$0xff]
      %v675 = vld [vmem:[#allocation2 + $0x10] sm:$0xff]
      %v676 = vld [vmem:[#allocation2 + $0x18] sm:$0xff]
      %v677 = vld [vmem:[#allocation2 + $0x20] sm:$0xff]
      %v678 = vld [vmem:[#allocation2 + $0x28] sm:$0xff]
      %v679 = vld [vmem:[#allocation2 + $0x30] sm:$0xff]
      %v680 = vld [vmem:[#allocation2 + $0x38] sm:$0xff]
      %v681 = vld [vmem:[#allocation2 + $0x40] sm:$0xff]
      %v682 = vld [vmem:[#allocation2 + $0x48] sm:$0xff]
      %v683 = vld [vmem:[#allocation2 + $0x50] sm:$0xff]
      %v684 = vld [vmem:[#allocation2 + $0x58] sm:$0xff]
      %v685 = vld [vmem:[%s1] sm:$0xf]
      %v686 = vld [vmem:[%s1 + $0x4] sm:$0xf]
      %v687 = vld [vmem:[%s1 + $0x8] sm:$0xf]
      %v688 = vld [vmem:[%s1 + $0xc] sm:$0xf]
      %v689 = vld [vmem:[%s1 + $0x10] sm:$0xf]
      %v690 = vld [vmem:[%s1 + $0x14] sm:$0xf]
      %v691 = vld [vmem:[%s1 + $0x18] sm:$0xf]
      %v692 = vld [vmem:[%s1 + $0x1c] sm:$0xf]
      %v693 = vld [vmem:[%s1 + $0x20] sm:$0xf]
      %v694 = vld [vmem:[%s1 + $0x24] sm:$0xf]
      %v695 = vld [vmem:[%s1 + $0x28] sm:$0xf]
      %v696 = vld [vmem:[%s1 + $0x2c] sm:$0xf]
      %v697 = vld [vmem:[%s1 + $0x30] sm:$0xf]
      %v698 = vld [vmem:[%s1 + $0x34] sm:$0xf]
      %v699 = vld [vmem:[%s1 + $0x38] sm:$0xf]
      %v700 = vld [vmem:[%s1 + $0x3c] sm:$0xf]
      %v701 = vld [vmem:[%s1 + $0x40] sm:$0xf]
      %v702 = vld [vmem:[%s1 + $0x44] sm:$0xf]
      %v703 = vld [vmem:[%s1 + $0x48] sm:$0xf]
      %v704 = vld [vmem:[%s1 + $0x4c] sm:$0xf]
      %v705 = vld [vmem:[%s1 + $0x50] sm:$0xf]
      %v706 = vld [vmem:[%s1 + $0x54] sm:$0xf]
      %v707 = vld [vmem:[%s1 + $0x58] sm:$0xf]
      %v708 = vld [vmem:[%s1 + $0x5c] sm:$0xf]
      %v709 = vld [vmem:[%s1 + $0x60] sm:$0xf]
      %v710 = vld [vmem:[%s1 + $0x64] sm:$0xf]
      %v711 = vld [vmem:[%s1 + $0x68] sm:$0xf]
      %v712 = vld [vmem:[%s1 + $0x6c] sm:$0xf]
      %v713 = vld [vmem:[%s1 + $0x70] sm:$0xf]
      %v714 = vld [vmem:[%s1 + $0x74] sm:$0xf]
      %v715 = vld [vmem:[%s1 + $0x78] sm:$0xf]
      %v716 = vld [vmem:[%s1 + $0x7c] sm:$0xf]
      %v717 = vld [vmem:[%s1 + $0x80] sm:$0xf]
      %v718 = vld [vmem:[%s1 + $0x84] sm:$0xf]
      %v719 = vld [vmem:[%s1 + $0x88] sm:$0xf]
      %v720 = vld [vmem:[%s1 + $0x8c] sm:$0xf]
      %v721 = vld [vmem:[%s1 + $0x90] sm:$0xf]
      %v722 = vld [vmem:[%s1 + $0x94] sm:$0xf]
      %v723 = vld [vmem:[%s1 + $0x98] sm:$0xf]
      %v724 = vld [vmem:[%s1 + $0x9c] sm:$0xf]
      %v725 = vld [vmem:[%s1 + $0xa0] sm:$0xf]
      %v726 = vld [vmem:[%s1 + $0xa4] sm:$0xf]
      %v727 = vld [vmem:[%s1 + $0xa8] sm:$0xf]
      %v728 = vld [vmem:[%s1 + $0xac] sm:$0xf]
      %v729 = vld [vmem:[%s1 + $0xb0] sm:$0xf]
      %v730 = vld [vmem:[%s1 + $0xb4] sm:$0xf]
      %v731 = vld [vmem:[%s1 + $0xb8] sm:$0xf]
      %v732 = vld [vmem:[%s1 + $0xbc] sm:$0xf]
      %v733 = vld [vmem:[%s2] sm:$0x1]
      %v735 = vlaneseq
      %v736 = vshrl.u32 %v735, 7
      %v737 = vsub.s32 0, %v736
      %v738 = vrot.slane %v733, %v737
      %v788 = vunpack.c.l.b16 %v685
      %v789 = vunpack.c.l.b16 %v686
      %v790 = vunpack.c.l.b16 %v687
      %v791 = vunpack.c.l.b16 %v688
      %v792 = vunpack.c.l.b16 %v689
      %v793 = vunpack.c.l.b16 %v690
      %v794 = vunpack.c.l.b16 %v691
      %v795 = vunpack.c.l.b16 %v692
      %v796 = vunpack.c.l.b16 %v693
      %v797 = vunpack.c.l.b16 %v694
      %v798 = vunpack.c.l.b16 %v695
      %v799 = vunpack.c.l.b16 %v696
      %v800 = vunpack.c.l.b16 %v697
      %v801 = vunpack.c.l.b16 %v698
      %v802 = vunpack.c.l.b16 %v699
      %v803 = vunpack.c.l.b16 %v700
      %v804 = vunpack.c.l.b16 %v701
      %v805 = vunpack.c.l.b16 %v702
      %v806 = vunpack.c.l.b16 %v703
      %v807 = vunpack.c.l.b16 %v704
      %v808 = vunpack.c.l.b16 %v705
      %v809 = vunpack.c.l.b16 %v706
      %v810 = vunpack.c.l.b16 %v707
      %v811 = vunpack.c.l.b16 %v708
      %v812 = vunpack.c.l.b16 %v709
      %v813 = vunpack.c.l.b16 %v710
      %v814 = vunpack.c.l.b16 %v711
      %v815 = vunpack.c.l.b16 %v712
      %v816 = vunpack.c.l.b16 %v713
      %v817 = vunpack.c.l.b16 %v714
      %v818 = vunpack.c.l.b16 %v715
      %v819 = vunpack.c.l.b16 %v716
      %v820 = vunpack.c.l.b16 %v717
      %v821 = vunpack.c.l.b16 %v718
      %v822 = vunpack.c.l.b16 %v719
      %v823 = vunpack.c.l.b16 %v720
      %v824 = vunpack.c.l.b16 %v721
      %v825 = vunpack.c.l.b16 %v722
      %v826 = vunpack.c.l.b16 %v723
      %v827 = vunpack.c.l.b16 %v724
      %v828 = vunpack.c.l.b16 %v725
      %v829 = vunpack.c.l.b16 %v726
      %v830 = vunpack.c.l.b16 %v727
      %v831 = vunpack.c.l.b16 %v728
      %v832 = vunpack.c.l.b16 %v729
      %v833 = vunpack.c.l.b16 %v730
      %v834 = vunpack.c.l.b16 %v731
      %v835 = vunpack.c.l.b16 %v732
      %v836 = vpack.c.b16 %v789, %v788
      %v837 = vpack.c.b16 %v791, %v790
      %v838 = vpack.c.b16 %v793, %v792
      %v839 = vpack.c.b16 %v795, %v794
      %v840 = vpack.c.b16 %v797, %v796
      %v841 = vpack.c.b16 %v799, %v798
      %v842 = vpack.c.b16 %v801, %v800
      %v843 = vpack.c.b16 %v803, %v802
      %v844 = vpack.c.b16 %v805, %v804
      %v845 = vpack.c.b16 %v807, %v806
      %v846 = vpack.c.b16 %v809, %v808
      %v847 = vpack.c.b16 %v811, %v810
      %v848 = vpack.c.b16 %v813, %v812
      %v849 = vpack.c.b16 %v815, %v814
      %v850 = vpack.c.b16 %v817, %v816
      %v851 = vpack.c.b16 %v819, %v818
      %v852 = vpack.c.b16 %v821, %v820
      %v853 = vpack.c.b16 %v823, %v822
      %v854 = vpack.c.b16 %v825, %v824
      %v855 = vpack.c.b16 %v827, %v826
      %v856 = vpack.c.b16 %v829, %v828
      %v857 = vpack.c.b16 %v831, %v830
      %v858 = vpack.c.b16 %v833, %v832
      %v859 = vpack.c.b16 %v835, %v834
      %884 = vmatprep.subr.bf16.mxu0 0
      %885 = vmatpush1.bf16.msra.mxu0 %v836
      %886 = vmatprep.subr.bf16.mxu0 0
      %887 = vmatpush1.bf16.msra.mxu0 %v837
      %888 = vmatprep.subr.bf16.mxu0 0
      %889 = vmatpush1.bf16.msra.mxu0 %v838
      %890 = vmatprep.subr.bf16.mxu0 0
      %891 = vmatpush1.bf16.msra.mxu0 %v839
      %892 = vmatprep.subr.bf16.mxu0 0
      %893 = vmatpush1.bf16.msra.mxu0 %v840
      %894 = vmatprep.subr.bf16.mxu0 0
      %895 = vmatpush1.bf16.msra.mxu0 %v841
      %896 = vmatprep.subr.bf16.mxu0 0
      %897 = vmatpush1.bf16.msra.mxu0 %v842
      %898 = vmatprep.subr.bf16.mxu0 0
      %899 = vmatpush1.bf16.msra.mxu0 %v843
      %900 = vmatprep.subr.bf16.mxu0 0
      %901 = vmatpush1.bf16.msra.mxu0 %v844
      %902 = vmatprep.subr.bf16.mxu0 0
      %903 = vmatpush1.bf16.msra.mxu0 %v845
      %904 = vmatprep.subr.bf16.mxu0 0
      %905 = vmatpush1.bf16.msra.mxu0 %v846
      %906 = vmatprep.subr.bf16.mxu0 0
      %907 = vmatpush1.bf16.msra.mxu0 %v847
      %908 = vmatprep.subr.bf16.mxu0 0
      %909 = vmatpush1.bf16.msra.mxu0 %v848
      %910 = vmatprep.subr.bf16.mxu0 0
      %911 = vmatpush1.bf16.msra.mxu0 %v849
      %912 = vmatprep.subr.bf16.mxu0 0
      %913 = vmatpush1.bf16.msra.mxu0 %v850
      %914 = vmatprep.subr.bf16.mxu0 0
      %915 = vmatpush1.bf16.msra.mxu0 %v851
      %916 = vmatprep.mubr.bf16.mxu0 %v674
      %917 = vmatmul.mubr.bf16.gmra.mrb[0].mxu0 %v673
      %v918 = vpop.f32.mrb[0].mxu0
      %v919 = vadd.f32 %v738, %v918
      %v920 = vpop.f32.mrb[0].mxu0
      %v921 = vpop.f32.mrb[0].mxu0
      %v922 = vadd.f32 %v738, %v921
      %v923 = vpop.f32.mrb[0].mxu0
      %924 = vmatprep.mubr.bf16.mxu0 %v677
      %925 = vmatmul.mubr.bf16.gmra.mrb[0].mxu0 %v676
      %v926 = vpop.f32.mrb[0].mxu0
      %v927 = vadd.f32 %v738, %v926
      %v928 = vpop.f32.mrb[0].mxu0
      %v929 = vpop.f32.mrb[0].mxu0
      %v930 = vadd.f32 %v738, %v929
      %v931 = vpop.f32.mrb[0].mxu0
      %932 = vmatprep.mubr.bf16.mxu0 %v680
      %933 = vmatmul.mubr.bf16.gmra.mrb[0].mxu0 %v679
      %v934 = vpop.f32.mrb[0].mxu0
      %v935 = vadd.f32 %v738, %v934
      %v936 = vpop.f32.mrb[0].mxu0
      %v937 = vpop.f32.mrb[0].mxu0
      %v938 = vadd.f32 %v738, %v937
      %v939 = vpop.f32.mrb[0].mxu0
      %940 = vmatprep.mubr.bf16.mxu0 %v683
      %941 = vmatmul.mubr.bf16.gmra.mrb[0].mxu0 %v682
      %v942 = vpop.f32.mrb[0].mxu0
      %v943 = vadd.f32 %v738, %v942
      %v944 = vpop.f32.mrb[0].mxu0
      %v945 = vpop.f32.mrb[0].mxu0
      %v946 = vadd.f32 %v738, %v945
      %v947 = vpop.f32.mrb[0].mxu0
      %948 = vdwg.mxu0
      %949 = vmatprep.subr.bf16.mxu0 0
      %950 = vmatpush1.bf16.msra.mxu0 %v852
      %951 = vmatprep.subr.bf16.mxu0 0
      %952 = vmatpush1.bf16.msra.mxu0 %v853
      %953 = vmatprep.subr.bf16.mxu0 0
      %954 = vmatpush1.bf16.msra.mxu0 %v854
      %955 = vmatprep.subr.bf16.mxu0 0
      %956 = vmatpush1.bf16.msra.mxu0 %v855
      %957 = vmatprep.subr.bf16.mxu0 0
      %958 = vmatpush1.bf16.msra.mxu0 %v856
      %959 = vmatprep.subr.bf16.mxu0 0
      %960 = vmatpush1.bf16.msra.mxu0 %v857
      %961 = vmatprep.subr.bf16.mxu0 0
      %962 = vmatpush1.bf16.msra.mxu0 %v858
      %963 = vmatprep.subr.bf16.mxu0 0
      %964 = vmatpush1.bf16.msra.mxu0 %v859
      %965 = vmatprep.subr.bf16.mxu0 0
      %966 = vmatpush1.bf16.msra.mxu0 0
      %967 = vmatprep.subr.bf16.mxu0 0
      %968 = vmatpush1.bf16.msra.mxu0 0
      %969 = vmatprep.subr.bf16.mxu0 0
      %970 = vmatpush1.bf16.msra.mxu0 0
      %971 = vmatprep.subr.bf16.mxu0 0
      %972 = vmatpush1.bf16.msra.mxu0 0
      %973 = vmatprep.subr.bf16.mxu0 0
      %974 = vmatpush1.bf16.msra.mxu0 0
      %975 = vmatprep.subr.bf16.mxu0 0
      %976 = vmatpush1.bf16.msra.mxu0 0
      %977 = vmatprep.subr.bf16.mxu0 0
      %978 = vmatpush1.bf16.msra.mxu0 0
      %979 = vmatprep.subr.bf16.mxu0 0
      %980 = vmatpush1.bf16.msra.mxu0 0
      %981 = vmatprep.mubr.bf16.mxu0 0
      %982 = vmatmul.mubr.bf16.gmra.mrb[0].mxu0 %v675
      %v983 = vpop.f32.mrb[0].mxu0
      %v984 = vadd.f32 %v919, %v983
      %v985 = vpop.f32.mrb[0].mxu0
      %v986 = vpop.f32.mrb[0].mxu0
      %v987 = vadd.f32 %v922, %v986
      %v988 = vpop.f32.mrb[0].mxu0
      %989 = vmatprep.mubr.bf16.mxu0 0
      %990 = vmatmul.mubr.bf16.gmra.mrb[0].mxu0 %v678
      %v991 = vpop.f32.mrb[0].mxu0
      %v992 = vadd.f32 %v927, %v991
      %v993 = vpop.f32.mrb[0].mxu0
      %v994 = vpop.f32.mrb[0].mxu0
      %v995 = vadd.f32 %v930, %v994
      %v996 = vpop.f32.mrb[0].mxu0
      %997 = vmatprep.mubr.bf16.mxu0 0
      %998 = vmatmul.mubr.bf16.gmra.mrb[0].mxu0 %v681
      %v999 = vpop.f32.mrb[0].mxu0
      %v1000 = vadd.f32 %v935, %v999
      %v1001 = vpop.f32.mrb[0].mxu0
      %v1002 = vpop.f32.mrb[0].mxu0
      %v1003 = vadd.f32 %v938, %v1002
      %v1004 = vpop.f32.mrb[0].mxu0
      %1005 = vmatprep.mubr.bf16.mxu0 0
      %1006 = vmatmul.mubr.bf16.gmra.mrb[0].mxu0 %v684
      %v1007 = vpop.f32.mrb[0].mxu0
      %v1008 = vadd.f32 %v943, %v1007
      %v1009 = vpop.f32.mrb[0].mxu0
      %v1010 = vpop.f32.mrb[0].mxu0
      %v1011 = vadd.f32 %v946, %v1010
      %v1012 = vpop.f32.mrb[0].mxu0
      %1013 = vdwg.mxu0
      %v1014 = vmax.f32 %v984, 0.0
      %v1015 = vmax.f32 %v987, 0.0
      %v1016 = vmax.f32 %v992, 0.0
      %v1017 = vmax.f32 %v995, 0.0
      %v1018 = vmax.f32 %v1000, 0.0
      %v1019 = vmax.f32 %v1003, 0.0
      %v1020 = vmax.f32 %v1008, 0.0
      %v1021 = vmax.f32 %v1011, 0.0
      %v1022 = vpack.c.bf16 %v1015, %v1014
      %v1023 = vpack.c.bf16 %v1017, %v1016
      %v1024 = vpack.c.bf16 %v1019, %v1018
      %v1025 = vpack.c.bf16 %v1021, %v1020
      %v1030 = vunpack.c.l.b16 %v1022
      %v1031 = vunpack.c.h.b16 %v1022
      %v1032 = vunpack.c.l.b16 %v1023
      %v1033 = vunpack.c.h.b16 %v1023
      %v1034 = vunpack.c.l.b16 %v1024
      %v1035 = vunpack.c.h.b16 %v1024
      %v1036 = vunpack.c.l.b16 %v1025
      %v1037 = vunpack.c.h.b16 %v1025
      %v1038 = vpack.c.b16 %v1030, %v1030
      %v1039 = vpack.c.b16 %v1031, %v1031
      %v1040 = vpack.c.b16 %v1032, %v1032
      %v1041 = vpack.c.b16 %v1033, %v1033
      %v1042 = vpack.c.b16 %v1034, %v1034
      %v1043 = vpack.c.b16 %v1035, %v1035
      %v1044 = vpack.c.b16 %v1036, %v1036
      %v1045 = vpack.c.b16 %v1037, %v1037
      %1054 = vst [vmem:[%s206] sm:$0xf] %v1038
      %1055 = vst [vmem:[%s206 + $0x4] sm:$0xf] %v1039
      %1056 = vst [vmem:[%s206 + $0x8] sm:$0xf] %v1040
      %1057 = vst [vmem:[%s206 + $0xc] sm:$0xf] %v1041
      %1058 = vst [vmem:[%s206 + $0x10] sm:$0xf] %v1042
      %1059 = vst [vmem:[%s206 + $0x14] sm:$0xf] %v1043
      %1060 = vst [vmem:[%s206 + $0x18] sm:$0xf] %v1044
      %1061 = vst [vmem:[%s206 + $0x1c] sm:$0xf] %v1045
      %s1062 = smul.u32 8, %s19
      %p1063 = scmp.lt.s32.totalorder %s18, 1
      %s1064 = scalar_select %p1063, %s18, 1
      %p1065 = scmp.lt.s32.totalorder %s1062, 31
      %s1066 = scalar_select %p1065, %s1062, 31
      %s1067 = smul.addr %s1064, 32
      %s1068 = sadd.s32 %s1066, %s1067
      %s1069 = smul.addr %s1068, 4
      %s1070 = scalar_lea.vmem %s3, %s1069
      // Predicated region
      $region33: #{conv2d_block.1} parent=31 // pred_check
        %p1071 = pneg %p116
      $region34: #{conv2d_block.1} parent=31 // pred_check_branch
        %1073 = sbr.rel (%p1071) target = $region36
      $region35: #{conv2d_block.1} parent=31 // pred_region
        %s1074 = smul.u32 8, %s19
      $region36: #{conv2d_block.1} parent=31 // pred_fallthru
        _
    $region32: #{conv2d_block.1} parent=5 // pred_fallthru
      _
    %p1075 = scmp.le.s32.totalorder 2, %s9
    // Predicated region
    $region37: #{conv2d_block.1} parent=5 // pred_check
      %p1076 = pneg %p1075
    $region38: #{conv2d_block.1} parent=5 // pred_check_branch
      %1078 = sbr.rel (%p1076) target = $region40
    $region39: #{conv2d_block.1} parent=5 // pred_region
      %s1079 = ssub.s32 %s9, 2
      // Predicated region
      $region41: #{conv2d_block.1} parent=39 // pred_check
        %p1080 = pneg %p122
      $region42: #{conv2d_block.1} parent=39 // pred_check_branch
        %1082 = sbr.rel (%p1080) target = $region44
      $region43: #{conv2d_block.1} parent=39 // pred_region
        %s1083 = smul.u32 8, %s21
        %p1084 = scmp.lt.s32.totalorder %s20, 1
        %s1085 = scalar_select %p1084, %s20, 1
        %p1086 = scmp.lt.s32.totalorder %s1083, 31
        %s1087 = scalar_select %p1086, %s1083, 31
        %s1088 = smul.addr %s1085, 32
        %s1089 = sadd.s32 %s1087, %s1088
        %s1090 = smul.addr %s1089, 4
        %s1091 = scalar_lea.vmem %s3, %s1090
      $region44: #{conv2d_block.1} parent=39 // pred_fallthru
        _
    $region40: #{conv2d_block.1} parent=5 // pred_fallthru
      _
  $region6: #{conv2d_block.1} parent=0 // loop_footer
    %s13 = sadd.s32 1, %s9
  $region7: #{conv2d_block.1} parent=0 // loop_footer_branch
    %8 = sbr.rel target = $region3
  $region8: #{conv2d_block.1} parent=0 // loop_exit
    _

</llo_original>
